<compile_context>
chip_gen: v6e
topology: v6e:2x2x1
jax: 0.10.0
libtpu: 0.0.40
codegen_flags: <defaults>
</compile_context>

<pallas_src>
import jax
import jax.numpy as jnp
from jax.experimental import pallas as pl
from jax.experimental.pallas import tpu as pltpu


def _round_up(x, m):
    return ((x + m - 1) // m) * m


def _gelu_tanh(x):
    # GELU tanh approximation (matches torch.nn.GELU(approximate='tanh')).
    # Keep in f32: `x` arrives as the f32 matmul accumulator.
    c = jnp.sqrt(jnp.asarray(2.0 / jnp.pi, dtype=x.dtype))
    return 0.5 * x * (1.0 + jnp.tanh(c * (x + 0.044715 * (x * x * x))))


def mlp_kernel(x_ref, wfc_ref, bfc_ref, wproj_ref, bproj_ref, o_ref, acc_ref):
    """One (tm, D) token tile x one (th) hidden tile.

    grid = (M_tiles, H_tiles); H is the reduction axis for the second matmul,
    accumulated into acc_ref (f32 VMEM scratch), output written at the last H step.
    """
    h_idx = pl.program_id(1)

    @pl.when(h_idx == 0)
    def _():
        acc_ref[...] = jnp.zeros_like(acc_ref)

    # (tm, D) bf16 @ (D, th) bf16 -> (tm, th) f32
    h = jnp.dot(x_ref[...], wfc_ref[...], preferred_element_type=jnp.float32)
    h = _gelu_tanh(h + bfc_ref[...])                       # f32 bias + f32 GELU

    # (tm, th) bf16 @ (th, D) bf16 -> accumulate (tm, D) f32
    acc_ref[...] += jnp.dot(h.astype(wproj_ref.dtype), wproj_ref[...],
                            preferred_element_type=jnp.float32)

    @pl.when(h_idx == pl.num_programs(1) - 1)
    def _():
        o_ref[...] = (acc_ref[...] + bproj_ref[...]).astype(o_ref.dtype)


def mlp_pallas(x, w_fc, b_fc, w_proj, b_proj, *, tm=256, th=512,
               compute_dtype=jnp.bfloat16):
    """x: (B, T, D). w_fc: (D, H), b_fc: (H,), w_proj: (H, D), b_proj: (D,)."""
    B, T, D = x.shape
    H = w_fc.shape[1]
    M = B * T

    # --- tile sizes (lane-dense, sublane-aligned) ------------------------------
    # Token tile: multiple of 16 (bf16 sublane packing), capped by the problem size.
    tm = max(16, min(tm, _round_up(M, 16)))
    tm = _round_up(tm, 16)
    M_pad = _round_up(M, tm)

    # Hidden tile: multiple of 128 (lane width), capped by the (padded) hidden dim.
    th = _round_up(min(th, _round_up(H, 128)), 128)
    H_pad = _round_up(H, th)

    # Lane-dense embedding dim (output last dim >= 128, full MXU width).
    D_pad = _round_up(D, 128)

    # --- pad + cast inputs (zero padding is exact for this computation) --------
    x2 = jnp.pad(x.reshape(M, D), ((0, M_pad - M), (0, D_pad - D)))
    x2 = x2.astype(compute_dtype)
    wfc_p = jnp.pad(w_fc, ((0, D_pad - D), (0, H_pad - H))).astype(compute_dtype)
    wproj_p = jnp.pad(w_proj, ((0, H_pad - H), (0, D_pad - D))).astype(compute_dtype)
    bfc_p = jnp.pad(b_fc, ((0, H_pad - H),)).reshape(1, H_pad).astype(jnp.float32)
    bproj_p = jnp.pad(b_proj, ((0, D_pad - D),)).reshape(1, D_pad).astype(jnp.float32)

    n_m_tiles = M_pad // tm
    n_h_tiles = H_pad // th

    # Advisory cost for XLA's scheduler around this custom call.
    cost = pl.CostEstimate(
        flops=2 * M_pad * D_pad * H_pad * 2,                  # two matmuls
        transcendentals=M_pad * H_pad,                        # tanh in GELU
        bytes_accessed=(M_pad * D_pad * 2                     # x (bf16)
                        + n_m_tiles * 2 * D_pad * H_pad * 2   # streamed weights
                        + M_pad * D_pad * jnp.dtype(x.dtype).itemsize),  # out
    )

    out = pl.pallas_call(
        mlp_kernel,
        out_shape=jax.ShapeDtypeStruct((M_pad, D_pad), x.dtype),
        grid_spec=pltpu.PrefetchScalarGridSpec(
            num_scalar_prefetch=0,
            grid=(n_m_tiles, n_h_tiles),
            in_specs=[
                pl.BlockSpec((tm, D_pad), lambda i, h: (i, 0)),   # x tile (reused over h)
                pl.BlockSpec((D_pad, th), lambda i, h: (0, h)),   # w_fc streamed over h
                pl.BlockSpec((1, th), lambda i, h: (0, h)),       # b_fc tile (f32)
                pl.BlockSpec((th, D_pad), lambda i, h: (h, 0)),   # w_proj streamed over h
                pl.BlockSpec((1, D_pad), lambda i, h: (0, 0)),    # b_proj (small, resident)
            ],
            out_specs=pl.BlockSpec((tm, D_pad), lambda i, h: (i, 0)),
            scratch_shapes=[pltpu.VMEM((tm, D_pad), jnp.float32)],  # f32 accumulator
        ),
        compiler_params=pltpu.CompilerParams(
            # M axis parallel (megacore on v7x), H axis is the reduction.
            dimension_semantics=("parallel", "arbitrary")),
        cost_estimate=cost,
    )(x2, wfc_p, bfc_p, wproj_p, bproj_p)

    return out[:M, :D].reshape(B, T, D)


def mlp_reference(x, w_fc, b_fc, w_proj, b_proj):
    h = jnp.einsum("btd,dh->bth", x, w_fc) + b_fc
    h = _gelu_tanh(h)
    return jnp.einsum("bth,hd->btd", h, w_proj) + b_proj


if __name__ == "__main__":
    # Small config consistent with the module: n_embd=32, hidden=4*n_embd=128
    B, T, D = 2, 8, 32
    H = 4 * D

    key = jax.random.PRNGKey(0)
    kx, k1, k2, k3, k4 = jax.random.split(key, 5)

    x = jax.random.normal(kx, (B, T, D), dtype=jnp.float32)

    # Deterministic parameter init (PyTorch-Linear-like uniform bounds).
    bound_fc = 1.0 / jnp.sqrt(D)
    bound_proj = 1.0 / jnp.sqrt(H)
    # Stored transposed vs torch: (in_features, out_features) so kernel does x @ W.
    w_fc = jax.random.uniform(k1, (D, H), jnp.float32, -bound_fc, bound_fc)
    b_fc = jax.random.uniform(k2, (H,), jnp.float32, -bound_fc, bound_fc)
    w_proj = jax.random.uniform(k3, (H, D), jnp.float32, -bound_proj, bound_proj)
    b_proj = jax.random.uniform(k4, (D,), jnp.float32, -bound_proj, bound_proj)

    y = mlp_pallas(x, w_fc, b_fc, w_proj, b_proj)
    y = jax.block_until_ready(y)

    y_ref = mlp_reference(x, w_fc, b_fc, w_proj, b_proj)
    assert y.shape == (B, T, D)
    # bf16 MXU inputs with f32 accumulation: loosened tolerance vs pure-f32 ref.
    assert jnp.allclose(y, y_ref, atol=2e-2, rtol=2e-2), "mismatch vs reference"

    print("KERNEL_OK")
</pallas_src>

<mosaic_0001>
module attributes {stable_mosaic.version = 11 : i64} {
  func.func @mlp_kernel(%arg0: i32, %arg1: i32, %arg2: memref<16x128xbf16, #tpu.memory_space<vmem>>, %arg3: memref<128x128xbf16, #tpu.memory_space<vmem>>, %arg4: memref<1x128xf32, #tpu.memory_space<vmem>>, %arg5: memref<128x128xbf16, #tpu.memory_space<vmem>>, %arg6: memref<1x128xf32, #tpu.memory_space<vmem>>, %arg7: memref<16x128xf32, #tpu.memory_space<vmem>>, %arg8: memref<16x128xf32, #tpu.memory_space<vmem>>) attributes {dimension_semantics = [#tpu.dimension_semantics<parallel>, #tpu.dimension_semantics<arbitrary>], iteration_bounds = array<i64: 1, 1>, scalar_prefetch = 0 : i64, scratch_operands = 1 : i64, tpu.core_type = #tpu.core_type<tc>, window_params = [{transform_indices = @transform_0, window_bounds = array<i64: 16, 128>}, {transform_indices = @transform_1, window_bounds = array<i64: 128, 128>}, {transform_indices = @transform_2, window_bounds = array<i64: 1, 128>}, {transform_indices = @transform_3, window_bounds = array<i64: 128, 128>}, {pipeline_mode = #tpu.pipeline_mode<synchronous>, transform_indices = @transform_4, window_bounds = array<i64: 1, 128>}, {transform_indices = @transform_5, window_bounds = array<i64: 16, 128>}]} {
    %c0_i32 = arith.constant 0 : i32
    %0 = arith.cmpi eq, %arg1, %c0_i32 : i32
    %1 = arith.extui %0 : i1 to i32
    %c0_i32_0 = arith.constant 0 : i32
    %2 = arith.cmpi ne, %1, %c0_i32_0 : i32
    scf.if %2 {
      %cst_19 = arith.constant 0.000000e+00 : f32
      %32 = vector.broadcast %cst_19 : f32 to vector<16x128xf32>
      %c0_20 = arith.constant 0 : index
      %c0_21 = arith.constant 0 : index
      %33 = vector.load %arg8[%c0_20, %c0_21] : memref<16x128xf32, #tpu.memory_space<vmem>>, vector<16x128xf32>
      tpu.vector_store %arg8[%c0_20, %c0_21], %32 {strides = array<i32>} : memref<16x128xf32, #tpu.memory_space<vmem>>, vector<16x128xf32>,
    } else {
    }
    %c0 = arith.constant 0 : index
    %c0_1 = arith.constant 0 : index
    %3 = vector.load %arg2[%c0, %c0_1] : memref<16x128xbf16, #tpu.memory_space<vmem>>, vector<16x128xbf16>
    %c0_2 = arith.constant 0 : index
    %c0_3 = arith.constant 0 : index
    %4 = vector.load %arg3[%c0_2, %c0_3] : memref<128x128xbf16, #tpu.memory_space<vmem>>, vector<128x128xbf16>
    %cst = arith.constant dense<0.000000e+00> : vector<16x128xf32>
    %5 = tpu.matmul %3, %4, %cst {dimension_numbers = #tpu.dot_dimension_numbers<[1], [0], [0], [1], [0, 0, 1, 1], [], []>} : vector<16x128xbf16>, vector<128x128xbf16>, vector<16x128xf32> -> vector<16x128xf32>
    %c0_4 = arith.constant 0 : index
    %c0_5 = arith.constant 0 : index
    %6 = vector.load %arg4[%c0_4, %c0_5] : memref<1x128xf32, #tpu.memory_space<vmem>>, vector<1x128xf32>
    %7 = vector.broadcast %6 : vector<1x128xf32> to vector<16x128xf32>
    %8 = arith.addf %5, %7 : vector<16x128xf32>
    %cst_6 = arith.constant 0.636619746 : f32
    %9 = math.sqrt %cst_6 : f32
    %cst_7 = arith.constant 5.000000e-01 : f32
    %10 = vector.broadcast %cst_7 : f32 to vector<16x128xf32>
    %11 = arith.mulf %10, %8 : vector<16x128xf32>
    %12 = arith.mulf %8, %8 : vector<16x128xf32>
    %13 = arith.mulf %12, %8 : vector<16x128xf32>
    %cst_8 = arith.constant 4.471500e-02 : f32
    %14 = vector.broadcast %cst_8 : f32 to vector<16x128xf32>
    %15 = arith.mulf %14, %13 : vector<16x128xf32>
    %16 = arith.addf %8, %15 : vector<16x128xf32>
    %17 = vector.broadcast %9 : f32 to vector<16x128xf32>
    %18 = arith.mulf %17, %16 : vector<16x128xf32>
    %19 = math.tanh %18 : vector<16x128xf32>
    %cst_9 = arith.constant 1.000000e+00 : f32
    %20 = vector.broadcast %cst_9 : f32 to vector<16x128xf32>
    %21 = arith.addf %20, %19 : vector<16x128xf32>
    %22 = arith.mulf %11, %21 : vector<16x128xf32>
    %c0_10 = arith.constant 0 : index
    %c0_11 = arith.constant 0 : index
    %23 = vector.load %arg8[%c0_10, %c0_11] : memref<16x128xf32, #tpu.memory_space<vmem>>, vector<16x128xf32>
    %24 = arith.truncf %22 : vector<16x128xf32> to vector<16x128xbf16>
    %c0_12 = arith.constant 0 : index
    %c0_13 = arith.constant 0 : index
    %25 = vector.load %arg5[%c0_12, %c0_13] : memref<128x128xbf16, #tpu.memory_space<vmem>>, vector<128x128xbf16>
    %cst_14 = arith.constant dense<0.000000e+00> : vector<16x128xf32>
    %26 = tpu.matmul %24, %25, %cst_14 {dimension_numbers = #tpu.dot_dimension_numbers<[1], [0], [0], [1], [0, 0, 1, 1], [], []>} : vector<16x128xbf16>, vector<128x128xbf16>, vector<16x128xf32> -> vector<16x128xf32>
    %27 = arith.addf %23, %26 : vector<16x128xf32>
    %c0_15 = arith.constant 0 : index
    %c0_16 = arith.constant 0 : index
    %28 = vector.load %arg8[%c0_15, %c0_16] : memref<16x128xf32, #tpu.memory_space<vmem>>, vector<16x128xf32>
    tpu.vector_store %arg8[%c0_15, %c0_16], %27 {strides = array<i32>} : memref<16x128xf32, #tpu.memory_space<vmem>>, vector<16x128xf32>,
    %c0_i32_17 = arith.constant 0 : i32
    %29 = arith.cmpi eq, %arg1, %c0_i32_17 : i32
    %30 = arith.extui %29 : i1 to i32
    %c0_i32_18 = arith.constant 0 : i32
    %31 = arith.cmpi ne, %30, %c0_i32_18 : i32
    scf.if %31 {
      %c0_19 = arith.constant 0 : index
      %c0_20 = arith.constant 0 : index
      %32 = vector.load %arg8[%c0_19, %c0_20] : memref<16x128xf32, #tpu.memory_space<vmem>>, vector<16x128xf32>
      %c0_21 = arith.constant 0 : index
      %c0_22 = arith.constant 0 : index
      %33 = vector.load %arg6[%c0_21, %c0_22] : memref<1x128xf32, #tpu.memory_space<vmem>>, vector<1x128xf32>
      %34 = vector.broadcast %33 : vector<1x128xf32> to vector<16x128xf32>
      %35 = arith.addf %32, %34 : vector<16x128xf32>
      %c0_23 = arith.constant 0 : index
      %c0_24 = arith.constant 0 : index
      %36 = vector.load %arg7[%c0_23, %c0_24] : memref<16x128xf32, #tpu.memory_space<vmem>>, vector<16x128xf32>
      tpu.vector_store %arg7[%c0_23, %c0_24], %35 {strides = array<i32>} : memref<16x128xf32, #tpu.memory_space<vmem>>, vector<16x128xf32>,
    } else {
    }
    return
  }
  func.func @transform_0(%arg0: i32, %arg1: i32) -> (i32, i32) {
    %c0_i32 = arith.constant 0 : i32
    %c0_i32_0 = arith.constant 0 : i32
    return %arg0, %c0_i32 : i32, i32
  }
  func.func @transform_1(%arg0: i32, %arg1: i32) -> (i32, i32) {
    %c0_i32 = arith.constant 0 : i32
    %c0_i32_0 = arith.constant 0 : i32
    return %c0_i32, %arg1 : i32, i32
  }
  func.func @transform_2(%arg0: i32, %arg1: i32) -> (i32, i32) {
    %c0_i32 = arith.constant 0 : i32
    %c0_i32_0 = arith.constant 0 : i32
    return %c0_i32, %arg1 : i32, i32
  }
  func.func @transform_3(%arg0: i32, %arg1: i32) -> (i32, i32) {
    %c0_i32 = arith.constant 0 : i32
    %c0_i32_0 = arith.constant 0 : i32
    return %arg1, %c0_i32 : i32, i32
  }
  func.func @transform_4(%arg0: i32, %arg1: i32) -> (i32, i32) {
    %c0_i32 = arith.constant 0 : i32
    %c0_i32_0 = arith.constant 0 : i32
    %c0_i32_1 = arith.constant 0 : i32
    return %c0_i32, %c0_i32_0 : i32, i32
  }
  func.func @transform_5(%arg0: i32, %arg1: i32) -> (i32, i32) {
    %c0_i32 = arith.constant 0 : i32
    %c0_i32_0 = arith.constant 0 : i32
    return %arg0, %c0_i32 : i32, i32
  }
}

</mosaic_0001>

<llo_original>
// kernel: tpu_custom_call.1
$region0: #{tpu_custom_call.1}
  #allocation0 [shape = 'u32[]', space=smem, size = 0x4, offset = 0x4, fixed_abs, tag = 'smem constant byte address 0x4 - core index']
  #allocation1 [shape = 'u32[144,128]{1,0:T(1,128)}', space=vmem, size = 0x12000, scoped, tag = 'internal scratch']
  #allocation2 [shape = 'f32[16,128]{1,0:T(8,128)}', space=vmem, size = 0x2000, scoped, tag = 'scratch operand']
  %s0 = inlined_call_operand.hbm [shape: bf16[16,128], index: 0, kind: input, shape index: {}]
  %s1 = inlined_call_operand.hbm [shape: bf16[128,128], index: 1, kind: input, shape index: {}]
  %s2 = inlined_call_operand.vmem [shape: f32[1,128], index: 2, kind: input, shape index: {}]
  %s3 = inlined_call_operand.hbm [shape: bf16[128,128], index: 3, kind: input, shape index: {}]
  %s4 = inlined_call_operand.vmem [shape: f32[1,128], index: 4, kind: input, shape index: {}]
  %s5 = inlined_call_operand.hbm [shape: f32[16,128], index: 5, kind: output, shape index: {}]
  %s6 = sld [smem:[#allocation0]]
  $region50: #{tpu_custom_call.1} parent=0
    _
  %s8 = ssub.s32 1, %s6
  %s9 = scalar_select 0, %s8, %s6
  $region1: #{tpu_custom_call.1} parent=0
    #allocation3 [shape = 'u8[4096]{0}', space=vmem, size = 0x1000, scoped, tag = 'input window, operand 0, single buffered']
    #allocation4 [shape = 's32[1]{0}', space=sflag, size = 0x4, scoped, tag = 'scoped memory for tpu_custom_call.1']
    #allocation5 [shape = 's32[1]{0}', space=sflag, size = 0x4, scoped, tag = 'scoped memory for tpu_custom_call.1']
    #allocation6 [shape = 'u8[32768]{0}', space=vmem, size = 0x8000, scoped, tag = 'input window, operand 1, single buffered']
    #allocation7 [shape = 's32[1]{0}', space=sflag, size = 0x4, scoped, tag = 'scoped memory for tpu_custom_call.1']
    #allocation8 [shape = 'u8[32768]{0}', space=vmem, size = 0x8000, scoped, tag = 'input window, operand 3, single buffered']
    #allocation9 [shape = 'u8[8192]{0}', space=vmem, size = 0x2000, scoped, tag = 'output window, operand 0, single buffered']
    %10 = vsyncpa [#allocation4], 0
    %11 = vsyncpa [#allocation7], 0
    %12 = vsyncpa [#allocation5], 0
    // Predicated region
    $region2: #{tpu_custom_call.1} parent=1 // pred_check
      _
    $region3: #{tpu_custom_call.1} parent=1 // pred_check_branch
      %14 = sbr.rel (0) target = $region5
    $region4: #{tpu_custom_call.1} parent=1 // pred_region
      %s16 = ssub.s32 128, 128
      %17 = vsyncadd [#allocation4], %s16
      %s18 = sshll.u32 [#allocation3], 4
      %s19 = int_to_ptr.vmem [resolvable:$true] %s18
      %24 = dma.hbm_to_vmem [thread:$0]  %s0, 128, %s19, [#allocation4], 64, 64, 4
    $region5: #{tpu_custom_call.1} parent=1 // pred_fallthru
      _
    // Predicated region
    $region6: #{tpu_custom_call.1} parent=1 // pred_check
      _
    $region7: #{tpu_custom_call.1} parent=1 // pred_check_branch
      %26 = sbr.rel (0) target = $region9
    $region8: #{tpu_custom_call.1} parent=1 // pred_region
      %s28 = ssub.s32 1024, 1024
      %29 = vsyncadd [#allocation7], %s28
      %s30 = sshll.u32 [#allocation6], 4
      %s31 = int_to_ptr.vmem [resolvable:$true] %s30
      %36 = dma.hbm_to_vmem [thread:$0]  %s1, 1024, %s31, [#allocation7], 64, 64, 4
    $region9: #{tpu_custom_call.1} parent=1 // pred_fallthru
      _
    // Predicated region
    $region10: #{tpu_custom_call.1} parent=1 // pred_check
      _
    $region11: #{tpu_custom_call.1} parent=1 // pred_check_branch
      %38 = sbr.rel (0) target = $region13
    $region12: #{tpu_custom_call.1} parent=1 // pred_region
      _
    $region13: #{tpu_custom_call.1} parent=1 // pred_fallthru
      _
    // Predicated region
    $region14: #{tpu_custom_call.1} parent=1 // pred_check
      _
    $region15: #{tpu_custom_call.1} parent=1 // pred_check_branch
      %40 = sbr.rel (0) target = $region17
    $region16: #{tpu_custom_call.1} parent=1 // pred_region
      %s42 = ssub.s32 1024, 1024
      %43 = vsyncadd [#allocation7], %s42
      %s44 = sshll.u32 [#allocation8], 4
      %s45 = int_to_ptr.vmem [resolvable:$true] %s44
      %50 = dma.hbm_to_vmem [thread:$0]  %s3, 1024, %s45, [#allocation7], 64, 64, 4
    $region17: #{tpu_custom_call.1} parent=1 // pred_fallthru
      _
    // Predicated region
    $region18: #{tpu_custom_call.1} parent=1 // pred_check
      _
    $region19: #{tpu_custom_call.1} parent=1 // pred_check_branch
      %52 = sbr.rel (0) target = $region21
    $region20: #{tpu_custom_call.1} parent=1 // pred_region
      _
    $region21: #{tpu_custom_call.1} parent=1 // pred_fallthru
      _
    // Predicated region
    $region22: #{tpu_custom_call.1} parent=1 // pred_check
      _
    $region23: #{tpu_custom_call.1} parent=1 // pred_check_branch
      %54 = sbr.rel (0) target = $region25
    $region24: #{tpu_custom_call.1} parent=1 // pred_region
      %55 = dma.done [#allocation4], 128
    $region25: #{tpu_custom_call.1} parent=1 // pred_fallthru
      _
    // Predicated region
    $region26: #{tpu_custom_call.1} parent=1 // pred_check
      _
    $region27: #{tpu_custom_call.1} parent=1 // pred_check_branch
      %57 = sbr.rel (0) target = $region29
    $region28: #{tpu_custom_call.1} parent=1 // pred_region
      %58 = dma.done [#allocation7], 1024
    $region29: #{tpu_custom_call.1} parent=1 // pred_fallthru
      _
    // Predicated region
    $region30: #{tpu_custom_call.1} parent=1 // pred_check
      _
    $region31: #{tpu_custom_call.1} parent=1 // pred_check_branch
      %60 = sbr.rel (0) target = $region33
    $region32: #{tpu_custom_call.1} parent=1 // pred_region
      %61 = dma.done [#allocation7], 1024
    $region33: #{tpu_custom_call.1} parent=1 // pred_fallthru
      _
    %p63 = scmp.eq.s32.totalorder 0, 0
    // Predicated region
    $region34: #{tpu_custom_call.1} parent=1 // pred_check
      %p64 = pneg %p63
    $region35: #{tpu_custom_call.1} parent=1 // pred_check_branch
      %66 = sbr.rel (%p64) target = $region37
    $region36: #{tpu_custom_call.1} parent=1 // pred_region
      %67 = vst [vmem:[#allocation2] sm:$0xff] 0.0
      %68 = vst [vmem:[#allocation2 + $0x8] sm:$0xff] 0.0
    $region37: #{tpu_custom_call.1} parent=1 // pred_fallthru
      _
    %v69 = vld [vmem:[#allocation3] sm:$0xf]
    %v70 = vld [vmem:[#allocation3 + $0x4] sm:$0xf]
    %v71 = vld [vmem:[#allocation6] sm:$0xf]
    %v72 = vld [vmem:[#allocation6 + $0x4] sm:$0xf]
    %v73 = vld [vmem:[#allocation6 + $0x8] sm:$0xf]
    %v74 = vld [vmem:[#allocation6 + $0xc] sm:$0xf]
    %v75 = vld [vmem:[#allocation6 + $0x10] sm:$0xf]
    %v76 = vld [vmem:[#allocation6 + $0x14] sm:$0xf]
    %v77 = vld [vmem:[#allocation6 + $0x18] sm:$0xf]
    %v78 = vld [vmem:[#allocation6 + $0x1c] sm:$0xf]
    %v79 = vld [vmem:[#allocation6 + $0x20] sm:$0xf]
    %v80 = vld [vmem:[#allocation6 + $0x24] sm:$0xf]
    %v81 = vld [vmem:[#allocation6 + $0x28] sm:$0xf]
    %v82 = vld [vmem:[#allocation6 + $0x2c] sm:$0xf]
    %v83 = vld [vmem:[#allocation6 + $0x30] sm:$0xf]
    %v84 = vld [vmem:[#allocation6 + $0x34] sm:$0xf]
    %v85 = vld [vmem:[#allocation6 + $0x38] sm:$0xf]
    %v86 = vld [vmem:[#allocation6 + $0x3c] sm:$0xf]
    %v87 = vld [vmem:[%s2] sm:$0x1]
    %v89 = vlaneseq
    %v90 = vshrl.u32 %v89, 7
    %v91 = vsub.s32 0, %v90
    %v92 = vrot.slane %v87, %v91
    %v96 = vunpack.c.l.b16 %v69
    %v97 = vunpack.c.l.b16 %v70
    %v98 = vpack.c.b16 %v97, %v96
    %v116 = vunpack.c.l.b16 %v71
    %v117 = vunpack.c.l.b16 %v72
    %v118 = vunpack.c.l.b16 %v73
    %v119 = vunpack.c.l.b16 %v74
    %v120 = vunpack.c.l.b16 %v75
    %v121 = vunpack.c.l.b16 %v76
    %v122 = vunpack.c.l.b16 %v77
    %v123 = vunpack.c.l.b16 %v78
    %v124 = vunpack.c.l.b16 %v79
    %v125 = vunpack.c.l.b16 %v80
    %v126 = vunpack.c.l.b16 %v81
    %v127 = vunpack.c.l.b16 %v82
    %v128 = vunpack.c.l.b16 %v83
    %v129 = vunpack.c.l.b16 %v84
    %v130 = vunpack.c.l.b16 %v85
    %v131 = vunpack.c.l.b16 %v86
    %v132 = vpack.c.b16 %v117, %v116
    %v133 = vpack.c.b16 %v119, %v118
    %v134 = vpack.c.b16 %v121, %v120
    %v135 = vpack.c.b16 %v123, %v122
    %v136 = vpack.c.b16 %v125, %v124
    %v137 = vpack.c.b16 %v127, %v126
    %v138 = vpack.c.b16 %v129, %v128
    %v139 = vpack.c.b16 %v131, %v130
    %148 = vmatprep.subr.bf16.mxu0 0
    %149 = vmatpush1.bf16.msra.mxu0 %v139
    %150 = vmatprep.subr.bf16.mxu0 0
    %151 = vmatpush1.bf16.msra.mxu0 %v138
    %152 = vmatprep.subr.bf16.mxu0 0
    %153 = vmatpush1.bf16.msra.mxu0 %v137
    %154 = vmatprep.subr.bf16.mxu0 0
    %155 = vmatpush1.bf16.msra.mxu0 %v136
    %156 = vmatprep.subr.bf16.mxu0 0
    %157 = vmatpush1.bf16.msra.mxu0 %v135
    %158 = vmatprep.subr.bf16.mxu0 0
    %159 = vmatpush1.bf16.msra.mxu0 %v134
    %160 = vmatprep.subr.bf16.mxu0 0
    %161 = vmatpush1.bf16.msra.mxu0 %v133
    %162 = vmatprep.subr.bf16.mxu0 0
    %163 = vmatpush1.bf16.msra.mxu0 %v132
    %164 = vmatprep.subr.bf16.mxu0 0
    %165 = vmatpush2.bf16.msra.mxu0 0
    %166 = vmatprep.subr.bf16.mxu0 0
    %167 = vmatpush2.bf16.msra.mxu0 0
    %168 = vmatprep.subr.bf16.mxu0 0
    %169 = vmatpush2.bf16.msra.mxu0 0
    %170 = vmatprep.subr.bf16.mxu0 0
    %171 = vmatpush2.bf16.msra.mxu0 0
    %172 = vmatprep.subr.bf16.mxu0 0
    %173 = vmatpush2.bf16.msra.mxu0 0
    %174 = vmatprep.subr.bf16.mxu0 0
    %175 = vmatpush2.bf16.msra.mxu0 0
    %176 = vmatprep.subr.bf16.mxu0 0
    %177 = vmatpush2.bf16.msra.mxu0 0
    %178 = vmatprep.subr.bf16.mxu0 0
    %179 = vmatpush2.bf16.msra.mxu0 0
    %180 = vmatprep.mubr.bf16.mxu0 0
    %181 = vmatmul.mubr.bf16.gmra.mxu0 %v98
    %v182 = vpop.f32.mrf.mxu0
    %v183 = vadd.f32 %v92, %v182
    %v184 = vpop.f32.mrf.mxu0
    %v185 = vpop.f32.mrf.mxu0
    %v186 = vadd.f32 %v92, %v185
    %v187 = vpop.f32.mrf.mxu0
    %188 = vdwg.mxu0
    %v189 = vmul.f32 %v183, 0.5
    %v190 = vmul.f32 %v186, 0.5
    %v191 = vmul.f32 %v183, %v183
    %v192 = vmul.f32 %v186, %v186
    %v193 = vmul.f32 %v191, %v183
    %v194 = vmul.f32 %v192, %v186
    %v195 = vmul.f32 %v193, 0.044715
    %v196 = vmul.f32 %v194, 0.044715
    %v197 = vadd.f32 %v183, %v195
    %v198 = vadd.f32 %v186, %v196
    %v199 = vmul.f32 %v197, 0.7978845
    %v200 = vmul.f32 %v198, 0.7978845
    %v201 = vtanh.pop %v199
    %v202 = vtanh.pop %v200
    %v203 = vadd.f32 %v201, 1.0
    %v204 = vadd.f32 %v202, 1.0
    %v205 = vmul.f32 %v189, %v203
    %v206 = vmul.f32 %v190, %v204
    %v207 = vld [vmem:[#allocation2] sm:$0xff]
    %v208 = vld [vmem:[#allocation2 + $0x8] sm:$0xff]
    %v209 = vpack.c.bf16 %v206, %v205
    %v210 = vld [vmem:[#allocation8] sm:$0xf]
    %v211 = vld [vmem:[#allocation8 + $0x4] sm:$0xf]
    %v212 = vld [vmem:[#allocation8 + $0x8] sm:$0xf]
    %v213 = vld [vmem:[#allocation8 + $0xc] sm:$0xf]
    %v214 = vld [vmem:[#allocation8 + $0x10] sm:$0xf]
    %v215 = vld [vmem:[#allocation8 + $0x14] sm:$0xf]
    %v216 = vld [vmem:[#allocation8 + $0x18] sm:$0xf]
    %v217 = vld [vmem:[#allocation8 + $0x1c] sm:$0xf]
    %v218 = vld [vmem:[#allocation8 + $0x20] sm:$0xf]
    %v219 = vld [vmem:[#allocation8 + $0x24] sm:$0xf]
    %v220 = vld [vmem:[#allocation8 + $0x28] sm:$0xf]
    %v221 = vld [vmem:[#allocation8 + $0x2c] sm:$0xf]
    %v222 = vld [vmem:[#allocation8 + $0x30] sm:$0xf]
    %v223 = vld [vmem:[#allocation8 + $0x34] sm:$0xf]
    %v224 = vld [vmem:[#allocation8 + $0x38] sm:$0xf]
    %v225 = vld [vmem:[#allocation8 + $0x3c] sm:$0xf]
    %v242 = vunpack.c.l.b16 %v210
    %v243 = vunpack.c.l.b16 %v211
    %v244 = vunpack.c.l.b16 %v212
    %v245 = vunpack.c.l.b16 %v213
    %v246 = vunpack.c.l.b16 %v214
    %v247 = vunpack.c.l.b16 %v215
    %v248 = vunpack.c.l.b16 %v216
    %v249 = vunpack.c.l.b16 %v217
    %v250 = vunpack.c.l.b16 %v218
    %v251 = vunpack.c.l.b16 %v219
    %v252 = vunpack.c.l.b16 %v220
    %v253 = vunpack.c.l.b16 %v221
    %v254 = vunpack.c.l.b16 %v222
    %v255 = vunpack.c.l.b16 %v223
    %v256 = vunpack.c.l.b16 %v224
    %v257 = vunpack.c.l.b16 %v225
    %v258 = vpack.c.b16 %v243, %v242
    %v259 = vpack.c.b16 %v245, %v244
    %v260 = vpack.c.b16 %v247, %v246
    %v261 = vpack.c.b16 %v249, %v248
    %v262 = vpack.c.b16 %v251, %v250
    %v263 = vpack.c.b16 %v253, %v252
    %v264 = vpack.c.b16 %v255, %v254
    %v265 = vpack.c.b16 %v257, %v256
    %274 = vmatprep.subr.bf16.mxu0 0
    %275 = vmatpush1.bf16.msra.mxu0 %v265
    %276 = vmatprep.subr.bf16.mxu0 0
    %277 = vmatpush1.bf16.msra.mxu0 %v264
    %278 = vmatprep.subr.bf16.mxu0 0
    %279 = vmatpush1.bf16.msra.mxu0 %v263
    %280 = vmatprep.subr.bf16.mxu0 0
    %281 = vmatpush1.bf16.msra.mxu0 %v262
    %282 = vmatprep.subr.bf16.mxu0 0
    %283 = vmatpush1.bf16.msra.mxu0 %v261
    %284 = vmatprep.subr.bf16.mxu0 0
    %285 = vmatpush1.bf16.msra.mxu0 %v260
    %286 = vmatprep.subr.bf16.mxu0 0
    %287 = vmatpush1.bf16.msra.mxu0 %v259
    %288 = vmatprep.subr.bf16.mxu0 0
    %289 = vmatpush1.bf16.msra.mxu0 %v258
    %290 = vmatprep.subr.bf16.mxu0 0
    %291 = vmatpush2.bf16.msra.mxu0 0
    %292 = vmatprep.subr.bf16.mxu0 0
    %293 = vmatpush2.bf16.msra.mxu0 0
    %294 = vmatprep.subr.bf16.mxu0 0
    %295 = vmatpush2.bf16.msra.mxu0 0
    %296 = vmatprep.subr.bf16.mxu0 0
    %297 = vmatpush2.bf16.msra.mxu0 0
    %298 = vmatprep.subr.bf16.mxu0 0
    %299 = vmatpush2.bf16.msra.mxu0 0
    %300 = vmatprep.subr.bf16.mxu0 0
    %301 = vmatpush2.bf16.msra.mxu0 0
    %302 = vmatprep.subr.bf16.mxu0 0
    %303 = vmatpush2.bf16.msra.mxu0 0
    %304 = vmatprep.subr.bf16.mxu0 0
    %305 = vmatpush2.bf16.msra.mxu0 0
    %306 = vmatprep.mubr.bf16.mxu0 0
    %307 = vmatmul.mubr.bf16.gmra.mxu0 %v209
    %v308 = vpop.f32.mrf.mxu0
    %v309 = vadd.f32 0.0, %v308
    %v310 = vpop.f32.mrf.mxu0
    %v311 = vpop.f32.mrf.mxu0
    %v312 = vadd.f32 0.0, %v311
    %v313 = vpop.f32.mrf.mxu0
    %314 = vdwg.mxu0
    %v315 = vadd.f32 %v207, %v309
    %v316 = vadd.f32 %v208, %v312
    %317 = vst [vmem:[#allocation2] sm:$0xff] %v315
    %318 = vst [vmem:[#allocation2 + $0x8] sm:$0xff] %v316
    // Predicated region
    $region38: #{tpu_custom_call.1} parent=1 // pred_check
      %p319 = pneg %p63
    $region39: #{tpu_custom_call.1} parent=1 // pred_check_branch
      %321 = sbr.rel (%p319) target = $region41
    $region40: #{tpu_custom_call.1} parent=1 // pred_region
      %v322 = vld [vmem:[#allocation2] sm:$0xff]
      %v323 = vld [vmem:[#allocation2 + $0x8] sm:$0xff]
      %v324 = vld [vmem:[%s4] sm:$0x1]
      %v326 = vlaneseq
      %v327 = vshrl.u32 %v326, 7
      %v328 = vsub.s32 0, %v327
      %v329 = vrot.slane %v324, %v328
      %v331 = vadd.f32 %v322, %v329
      %v332 = vadd.f32 %v323, %v329
      %333 = vst [vmem:[#allocation9] sm:$0xff] %v331
      %334 = vst [vmem:[#allocation9 + $0x8] sm:$0xff] %v332
    $region41: #{tpu_custom_call.1} parent=1 // pred_fallthru
      _
    // Predicated region
    $region42: #{tpu_custom_call.1} parent=1 // pred_check
      _
    $region43: #{tpu_custom_call.1} parent=1 // pred_check_branch
      %336 = sbr.rel (0) target = $region45
    $region44: #{tpu_custom_call.1} parent=1 // pred_region
      %s338 = ssub.s32 256, 256
      %339 = vsyncadd [#allocation5], %s338
      %s340 = sshll.u32 [#allocation9], 4
      %s341 = int_to_ptr.vmem [resolvable:$true] %s340
      %346 = dma.vmem_to_hbm [thread:$0]  %s341, 256, %s5, [#allocation5], 128, 128, 8
    $region45: #{tpu_custom_call.1} parent=1 // pred_fallthru
      _
    // Predicated region
    $region46: #{tpu_custom_call.1} parent=1 // pred_check
      _
    $region47: #{tpu_custom_call.1} parent=1 // pred_check_branch
      %348 = sbr.rel (0) target = $region49
    $region48: #{tpu_custom_call.1} parent=1 // pred_region
      %349 = dma.done [#allocation5], 256
    $region49: #{tpu_custom_call.1} parent=1 // pred_fallthru
      _
    %350 = vsyncpa [#allocation4], 1
    %351 = vsyncpa [#allocation7], 1
    %352 = vsyncpa [#allocation5], 1

</llo_original>
